<compile_context>
chip_gen: v7x
topology: tpu7x:2x2x1
jax: 0.10.0
libtpu: 0.0.40
codegen_flags: <defaults>
</compile_context>

<pallas_src>
import functools

import jax
import jax.numpy as jnp
from jax import lax
from jax.experimental import pallas as pl
from jax.experimental.pallas import tpu as pltpu


def _round_up(x, m):
    return (x + m - 1) // m * m


def _fused_vclip_kernel(mu_i_ref, lv_i_ref, mu_t_ref, lv_t_ref,     # [tile_n, D]
                        gmu_i_ref, glv_i_ref, geps_i_ref,           # [M, D] (resident)
                        gmu_t_ref, glv_t_ref, geps_t_ref,           # [M, D] (resident)
                        loss_ref,                                   # SMEM [1, 1] out
                        *, temperature, kl_weight, num_links, mxu_bf16):
    step = pl.program_id(0)

    # -------------------- init accumulator (first step) --------------------
    @pl.when(step == 0)
    def _():
        loss_ref[0, 0] = 0.0

    # -------------------- KL over this tile of N rows ----------------------
    # KL( N(mu_i, e^lv_i) || N(mu_t, e^lv_t) ), summed; stable 2-exp form.
    mu_i = mu_i_ref[...]
    lv_i = lv_i_ref[...]
    mu_t = mu_t_ref[...]
    lv_t = lv_t_ref[...]
    d_mu = mu_i - mu_t
    kl_part = 0.5 * jnp.sum(lv_t - lv_i - 1.0
                            + jnp.exp(lv_i - lv_t)
                            + d_mu * d_mu * jnp.exp(-lv_t))
    loss_ref[0, 0] += kl_part

    # -------------------- alignment branch (last step only) ----------------
    @pl.when(step == pl.num_programs(0) - 1)
    def _():
        # Bulk reparameterization of the M gathered rows (full vreg tiles).
        img = gmu_i_ref[...] + geps_i_ref[...] * jnp.exp(0.5 * glv_i_ref[...])
        txt = gmu_t_ref[...] + geps_t_ref[...] * jnp.exp(0.5 * glv_t_ref[...])

        # rsqrt row-normalization (F.normalize clamps ||x|| at 1e-12 -> clamp
        # the sum of squares at 1e-24); fold 1/temperature into the img scale.
        inv_t = 1.0 / temperature
        img_ss = jnp.sum(img * img, axis=-1, keepdims=True)
        txt_ss = jnp.sum(txt * txt, axis=-1, keepdims=True)
        img_s = img * (inv_t * lax.rsqrt(jnp.maximum(img_ss, 1e-24)))
        txt_n = txt * lax.rsqrt(jnp.maximum(txt_ss, 1e-24))

        # sim[m, k] = <img_s[m], txt_n[k]>  -- NT contraction on the MXU.
        if mxu_bf16:
            lhs = img_s.astype(jnp.bfloat16)
            rhs = txt_n.astype(jnp.bfloat16)
        else:
            lhs, rhs = img_s, txt_n
        sim = lax.dot_general(lhs, rhs,
                              dimension_numbers=(((1,), (1,)), ((), ())),
                              preferred_element_type=jnp.float32)     # [M, M]

        # Diagonal (labels == arange(M)) straight from the paired rows.
        sum_diag = jnp.sum(img_s * txt_n)

        # Row LSE (i2t) with one M^2 exp image.
        row_max = jnp.max(sim, axis=-1, keepdims=True)                # [M, 1]
        p = jnp.exp(sim - row_max)                                    # [M, M]
        lse_row = row_max + jnp.log(jnp.sum(p, axis=-1, keepdims=True))

        # Column LSE (t2i) re-derived from the same exponentials:
        #   sum_m exp(sim[m,k] - col_max[k])
        #     = exp(-col_max[k]) * sum_m p[m,k] * exp(row_max[m])
        # Safe: |sim| <= 1/temperature, so the rescale factors stay in f32 range.
        col_max = jnp.max(sim, axis=0, keepdims=True)                 # [1, M]
        col_sum = jnp.exp(-col_max) * jnp.sum(p * jnp.exp(row_max),
                                              axis=0, keepdims=True)
        lse_col = col_max + jnp.log(col_sum)

        align = (0.5 * (jnp.sum(lse_row) + jnp.sum(lse_col)) - sum_diag) / num_links
        loss_ref[0, 0] = align + kl_weight * loss_ref[0, 0]


def variational_clip_loss(clip_img_mu, clip_img_logvar,
                          clip_text_mu, clip_text_logvar,
                          train_links, eps_img, eps_txt,
                          temperature=0.07, kl_weight=0.01):
    n, d = clip_img_mu.shape
    m = train_links.shape[0]

    # ---- wrapper-side gather: only the M linked rows ever reach the kernel.
    idx_i = jnp.clip(train_links[:, 0].astype(jnp.int32), 0, n - 1)
    idx_t = jnp.clip(train_links[:, 1].astype(jnp.int32), 0, n - 1)
    gmu_i = jnp.take(clip_img_mu, idx_i, axis=0)
    glv_i = jnp.take(clip_img_logvar, idx_i, axis=0)
    geps_i = jnp.take(eps_img, idx_i, axis=0)
    gmu_t = jnp.take(clip_text_mu, idx_t, axis=0)
    glv_t = jnp.take(clip_text_logvar, idx_t, axis=0)
    geps_t = jnp.take(eps_txt, idx_t, axis=0)

    # ---- row tile for the HBM-bound KL reduction (lane-dense, multiple of 8,
    # sized so 4 inputs x 2 pipeline buffers fit scoped VMEM on every gen,
    # including v7x's 64 MiB).
    bytes_per_row = 4 * d * 4                          # 4 f32 inputs per row
    max_rows_vmem = max(8, (24 << 20) // (2 * bytes_per_row))
    tile_n = max(8, (min(512, max_rows_vmem) // 8) * 8)
    if n <= tile_n:
        tile_n = _round_up(max(n, 1), 8)
    n_pad = _round_up(n, tile_n)

    # Zero-padded rows (mu = logvar = 0) contribute exactly 0 to the KL.
    def pad_rows(x):
        return jnp.pad(x, ((0, n_pad - n), (0, 0))) if n_pad != n else x

    mu_i_p = pad_rows(clip_img_mu)
    lv_i_p = pad_rows(clip_img_logvar)
    mu_t_p = pad_rows(clip_text_mu)
    lv_t_p = pad_rows(clip_text_logvar)

    grid = (n_pad // tile_n,)
    mxu_bf16 = bool(m >= 128 and d >= 128)   # bf16 MXU operands only at prod shapes

    kernel = functools.partial(_fused_vclip_kernel,
                               temperature=float(temperature),
                               kl_weight=float(kl_weight),
                               num_links=float(m),
                               mxu_bf16=mxu_bf16)

    row_spec = pl.BlockSpec((tile_n, d), lambda i: (i, 0))           # streamed
    res_spec = pl.BlockSpec((m, d), lambda i: (0, 0))                # resident

    grid_spec = pl.GridSpec(
        grid=grid,
        in_specs=[row_spec, row_spec, row_spec, row_spec,
                  res_spec, res_spec, res_spec, res_spec, res_spec, res_spec],
        out_specs=pl.BlockSpec((1, 1), lambda i: (0, 0),
                               memory_space=pltpu.MemorySpace.SMEM),
    )

    # Scoped-VMEM budget: streamed tiles (double-buffered) + resident gathers
    # + sim / exp intermediates, with slack.  Capped at v7x physical VMEM.
    vmem_bytes = (2 * 4 * tile_n * d * 4) + (2 * 6 * m * d * 4) + (3 * m * m * 4)
    vmem_bytes = int(min(max(vmem_bytes + (2 << 20), 4 << 20), 64 << 20))

    loss = pl.pallas_call(
        kernel,
        out_shape=jax.ShapeDtypeStruct((1, 1), jnp.float32),
        grid_spec=grid_spec,
        compiler_params=pltpu.CompilerParams(
            dimension_semantics=("arbitrary",),
            vmem_limit_bytes=vmem_bytes),
    )(mu_i_p, lv_i_p, mu_t_p, lv_t_p,
      gmu_i, glv_i, geps_i, gmu_t, glv_t, geps_t)
    return loss[0, 0]


# ----------------------------------------------------------------------------
# Pure-JAX reference (mirrors the PyTorch module, original KL formulation)
# ----------------------------------------------------------------------------
def _reference(mu_i, lv_i, mu_t, lv_t, links, eps_i, eps_t,
               temperature=0.07, kl_weight=0.01):
    z_i = mu_i + eps_i * jnp.exp(0.5 * lv_i)
    z_t = mu_t + eps_t * jnp.exp(0.5 * lv_t)
    z_i = z_i / jnp.maximum(jnp.linalg.norm(z_i, axis=-1, keepdims=True), 1e-12)
    z_t = z_t / jnp.maximum(jnp.linalg.norm(z_t, axis=-1, keepdims=True), 1e-12)
    a = z_i[links[:, 0]]
    b = z_t[links[:, 1]]
    sim = a @ b.T / temperature
    lse_r = jax.nn.logsumexp(sim, axis=-1)
    lse_c = jax.nn.logsumexp(sim, axis=0)
    diag = jnp.diagonal(sim)
    align = 0.5 * (jnp.mean(lse_r - diag) + jnp.mean(lse_c - diag))
    kl = 0.5 * jnp.sum(lv_t - lv_i - 1.0
                       + (jnp.exp(lv_i) + (mu_i - mu_t) ** 2) / jnp.exp(lv_t))
    return align + kl_weight * kl


if __name__ == "__main__":
    N, D, M = 16, 32, 8   # entities, feature dim, number of train links

    key = jax.random.PRNGKey(0)
    k1, k2, k3, k4, k5, k6, k7, k8 = jax.random.split(key, 8)

    clip_img_mu = jax.random.normal(k1, (N, D), dtype=jnp.float32)
    clip_img_logvar = 0.1 * jax.random.normal(k2, (N, D), dtype=jnp.float32)
    clip_text_mu = jax.random.normal(k3, (N, D), dtype=jnp.float32)
    clip_text_logvar = 0.1 * jax.random.normal(k4, (N, D), dtype=jnp.float32)

    train_links = jnp.stack(
        [jax.random.permutation(k5, N)[:M], jax.random.permutation(k6, N)[:M]],
        axis=1).astype(jnp.int32)

    # reparameterization noise (torch.randn_like equivalent, deterministic here)
    eps_img = jax.random.normal(k7, (N, D), dtype=jnp.float32)
    eps_txt = jax.random.normal(k8, (N, D), dtype=jnp.float32)

    out = variational_clip_loss(clip_img_mu, clip_img_logvar,
                                clip_text_mu, clip_text_logvar,
                                train_links, eps_img, eps_txt)
    out = jax.block_until_ready(out)

    ref = _reference(clip_img_mu, clip_img_logvar, clip_text_mu, clip_text_logvar,
                     train_links, eps_img, eps_txt)
    assert jnp.allclose(out, ref, rtol=1e-3, atol=1e-4), (out, ref)

    print("KERNEL_OK")
</pallas_src>

<mosaic_0001>
module attributes {stable_mosaic.version = 11 : i64} {
  func.func @_fused_vclip_kernel(%arg0: i32, %arg1: memref<16x32xf32, #tpu.memory_space<vmem>>, %arg2: memref<16x32xf32, #tpu.memory_space<vmem>>, %arg3: memref<16x32xf32, #tpu.memory_space<vmem>>, %arg4: memref<16x32xf32, #tpu.memory_space<vmem>>, %arg5: memref<8x32xf32, #tpu.memory_space<vmem>>, %arg6: memref<8x32xf32, #tpu.memory_space<vmem>>, %arg7: memref<8x32xf32, #tpu.memory_space<vmem>>, %arg8: memref<8x32xf32, #tpu.memory_space<vmem>>, %arg9: memref<8x32xf32, #tpu.memory_space<vmem>>, %arg10: memref<8x32xf32, #tpu.memory_space<vmem>>, %arg11: memref<1x1xf32, #tpu.memory_space<smem>>) attributes {dimension_semantics = [#tpu.dimension_semantics<arbitrary>], iteration_bounds = array<i64: 1>, scalar_prefetch = 0 : i64, scratch_operands = 0 : i64, tpu.core_type = #tpu.core_type<tc>, window_params = [{transform_indices = @transform_0, window_bounds = array<i64: 16, 32>}, {transform_indices = @transform_1, window_bounds = array<i64: 16, 32>}, {transform_indices = @transform_2, window_bounds = array<i64: 16, 32>}, {transform_indices = @transform_3, window_bounds = array<i64: 16, 32>}, {pipeline_mode = #tpu.pipeline_mode<synchronous>, transform_indices = @transform_4, window_bounds = array<i64: 8, 32>}, {pipeline_mode = #tpu.pipeline_mode<synchronous>, transform_indices = @transform_5, window_bounds = array<i64: 8, 32>}, {pipeline_mode = #tpu.pipeline_mode<synchronous>, transform_indices = @transform_6, window_bounds = array<i64: 8, 32>}, {pipeline_mode = #tpu.pipeline_mode<synchronous>, transform_indices = @transform_7, window_bounds = array<i64: 8, 32>}, {pipeline_mode = #tpu.pipeline_mode<synchronous>, transform_indices = @transform_8, window_bounds = array<i64: 8, 32>}, {pipeline_mode = #tpu.pipeline_mode<synchronous>, transform_indices = @transform_9, window_bounds = array<i64: 8, 32>}, {transform_indices = @transform_10, window_bounds = array<i64: 1, 1>}]} {
    %c0_i32 = arith.constant 0 : i32
    %0 = arith.cmpi eq, %arg0, %c0_i32 : i32
    %1 = arith.extui %0 : i1 to i32
    %c0_i32_0 = arith.constant 0 : i32
    %2 = arith.cmpi ne, %1, %c0_i32_0 : i32
    scf.if %2 {
      %cst_17 = arith.constant 0.000000e+00 : f32
      %c0_18 = arith.constant 0 : index
      %c0_19 = arith.constant 0 : index
      %31 = memref.load %arg11[%c0_18, %c0_19] : memref<1x1xf32, #tpu.memory_space<smem>>
      memref.store %cst_17, %arg11[%c0_18, %c0_19] : memref<1x1xf32, #tpu.memory_space<smem>>
    } else {
    }
    %c0 = arith.constant 0 : index
    %c0_1 = arith.constant 0 : index
    %3 = vector.load %arg1[%c0, %c0_1] : memref<16x32xf32, #tpu.memory_space<vmem>>, vector<16x32xf32>
    %c0_2 = arith.constant 0 : index
    %c0_3 = arith.constant 0 : index
    %4 = vector.load %arg2[%c0_2, %c0_3] : memref<16x32xf32, #tpu.memory_space<vmem>>, vector<16x32xf32>
    %c0_4 = arith.constant 0 : index
    %c0_5 = arith.constant 0 : index
    %5 = vector.load %arg3[%c0_4, %c0_5] : memref<16x32xf32, #tpu.memory_space<vmem>>, vector<16x32xf32>
    %c0_6 = arith.constant 0 : index
    %c0_7 = arith.constant 0 : index
    %6 = vector.load %arg4[%c0_6, %c0_7] : memref<16x32xf32, #tpu.memory_space<vmem>>, vector<16x32xf32>
    %7 = arith.subf %3, %5 : vector<16x32xf32>
    %8 = arith.subf %6, %4 : vector<16x32xf32>
    %cst = arith.constant 1.000000e+00 : f32
    %9 = vector.broadcast %cst : f32 to vector<16x32xf32>
    %10 = arith.subf %8, %9 : vector<16x32xf32>
    %11 = arith.subf %4, %6 : vector<16x32xf32>
    %12 = math.exp %11 : vector<16x32xf32>
    %13 = arith.addf %10, %12 : vector<16x32xf32>
    %14 = arith.mulf %7, %7 : vector<16x32xf32>
    %cst_8 = arith.constant 0.000000e+00 : f32
    %15 = vector.broadcast %cst_8 : f32 to vector<16x32xf32>
    %16 = arith.subf %15, %6 : vector<16x32xf32>
    %17 = math.exp %16 : vector<16x32xf32>
    %18 = arith.mulf %14, %17 : vector<16x32xf32>
    %19 = arith.addf %13, %18 : vector<16x32xf32>
    %20 = vector.shape_cast %19 : vector<16x32xf32> to vector<1x16x32xf32>
    %cst_9 = arith.constant dense<0.000000e+00> : vector<1xf32>
    %21 = vector.multi_reduction <add>, %20, %cst_9 [1, 2] : vector<1x16x32xf32> to vector<1xf32>
    %22 = vector.shape_cast %21 : vector<1xf32> to vector<1x1x1xf32>
    %23 = vector.extract %22[0, 0, 0] : f32 from vector<1x1x1xf32>
    %cst_10 = arith.constant 5.000000e-01 : f32
    %24 = arith.mulf %cst_10, %23 : f32
    %c0_11 = arith.constant 0 : index
    %c0_12 = arith.constant 0 : index
    %25 = memref.load %arg11[%c0_11, %c0_12] : memref<1x1xf32, #tpu.memory_space<smem>>
    %26 = arith.addf %25, %24 : f32
    %c0_13 = arith.constant 0 : index
    %c0_14 = arith.constant 0 : index
    %27 = memref.load %arg11[%c0_13, %c0_14] : memref<1x1xf32, #tpu.memory_space<smem>>
    memref.store %26, %arg11[%c0_13, %c0_14] : memref<1x1xf32, #tpu.memory_space<smem>>
    %c0_i32_15 = arith.constant 0 : i32
    %28 = arith.cmpi eq, %arg0, %c0_i32_15 : i32
    %29 = arith.extui %28 : i1 to i32
    %c0_i32_16 = arith.constant 0 : i32
    %30 = arith.cmpi ne, %29, %c0_i32_16 : i32
    scf.if %30 {
      %c0_17 = arith.constant 0 : index
      %c0_18 = arith.constant 0 : index
      %31 = vector.load %arg5[%c0_17, %c0_18] : memref<8x32xf32, #tpu.memory_space<vmem>>, vector<8x32xf32>
      %c0_19 = arith.constant 0 : index
      %c0_20 = arith.constant 0 : index
      %32 = vector.load %arg7[%c0_19, %c0_20] : memref<8x32xf32, #tpu.memory_space<vmem>>, vector<8x32xf32>
      %c0_21 = arith.constant 0 : index
      %c0_22 = arith.constant 0 : index
      %33 = vector.load %arg6[%c0_21, %c0_22] : memref<8x32xf32, #tpu.memory_space<vmem>>, vector<8x32xf32>
      %cst_23 = arith.constant 5.000000e-01 : f32
      %34 = vector.broadcast %cst_23 : f32 to vector<8x32xf32>
      %35 = arith.mulf %34, %33 : vector<8x32xf32>
      %36 = math.exp %35 : vector<8x32xf32>
      %37 = arith.mulf %32, %36 : vector<8x32xf32>
      %38 = arith.addf %31, %37 : vector<8x32xf32>
      %c0_24 = arith.constant 0 : index
      %c0_25 = arith.constant 0 : index
      %39 = vector.load %arg8[%c0_24, %c0_25] : memref<8x32xf32, #tpu.memory_space<vmem>>, vector<8x32xf32>
      %c0_26 = arith.constant 0 : index
      %c0_27 = arith.constant 0 : index
      %40 = vector.load %arg10[%c0_26, %c0_27] : memref<8x32xf32, #tpu.memory_space<vmem>>, vector<8x32xf32>
      %c0_28 = arith.constant 0 : index
      %c0_29 = arith.constant 0 : index
      %41 = vector.load %arg9[%c0_28, %c0_29] : memref<8x32xf32, #tpu.memory_space<vmem>>, vector<8x32xf32>
      %cst_30 = arith.constant 5.000000e-01 : f32
      %42 = vector.broadcast %cst_30 : f32 to vector<8x32xf32>
      %43 = arith.mulf %42, %41 : vector<8x32xf32>
      %44 = math.exp %43 : vector<8x32xf32>
      %45 = arith.mulf %40, %44 : vector<8x32xf32>
      %46 = arith.addf %39, %45 : vector<8x32xf32>
      %47 = arith.mulf %38, %38 : vector<8x32xf32>
      %cst_31 = arith.constant dense<0.000000e+00> : vector<8xf32>
      %48 = vector.multi_reduction <add>, %47, %cst_31 [1] : vector<8x32xf32> to vector<8xf32>
      %49 = vector.shape_cast %48 : vector<8xf32> to vector<8x1xf32>
      %50 = arith.mulf %46, %46 : vector<8x32xf32>
      %cst_32 = arith.constant dense<0.000000e+00> : vector<8xf32>
      %51 = vector.multi_reduction <add>, %50, %cst_32 [1] : vector<8x32xf32> to vector<8xf32>
      %52 = vector.shape_cast %51 : vector<8xf32> to vector<8x1xf32>
      %cst_33 = arith.constant 1.000000e-24 : f32
      %53 = vector.broadcast %cst_33 : f32 to vector<8x1xf32>
      %54 = arith.maximumf %49, %53 : vector<8x1xf32>
      %55 = math.rsqrt %54 : vector<8x1xf32>
      %cst_34 = arith.constant 14.2857141 : f32
      %56 = vector.broadcast %cst_34 : f32 to vector<8x1xf32>
      %57 = arith.mulf %56, %55 : vector<8x1xf32>
      %58 = vector.broadcast %57 : vector<8x1xf32> to vector<8x32xf32>
      %59 = arith.mulf %38, %58 : vector<8x32xf32>
      %cst_35 = arith.constant 1.000000e-24 : f32
      %60 = vector.broadcast %cst_35 : f32 to vector<8x1xf32>
      %61 = arith.maximumf %52, %60 : vector<8x1xf32>
      %62 = math.rsqrt %61 : vector<8x1xf32>
      %63 = vector.broadcast %62 : vector<8x1xf32> to vector<8x32xf32>
      %64 = arith.mulf %46, %63 : vector<8x32xf32>
      %cst_36 = arith.constant dense<0.000000e+00> : vector<8x8xf32>
      %65 = tpu.matmul %59, %64, %cst_36 {dimension_numbers = #tpu.dot_dimension_numbers<[1], [1], [0], [0], [0, 0, 1, 0], [], []>} : vector<8x32xf32>, vector<8x32xf32>, vector<8x8xf32> -> vector<8x8xf32>
      %66 = arith.mulf %59, %64 : vector<8x32xf32>
      %67 = vector.shape_cast %66 : vector<8x32xf32> to vector<1x8x32xf32>
      %cst_37 = arith.constant dense<0.000000e+00> : vector<1xf32>
      %68 = vector.multi_reduction <add>, %67, %cst_37 [1, 2] : vector<1x8x32xf32> to vector<1xf32>
      %69 = vector.shape_cast %68 : vector<1xf32> to vector<1x1x1xf32>
      %70 = vector.extract %69[0, 0, 0] : f32 from vector<1x1x1xf32>
      %cst_38 = arith.constant dense<0xFF800000> : vector<8xf32>
      %71 = vector.multi_reduction <maximumf>, %65, %cst_38 [1] : vector<8x8xf32> to vector<8xf32>
      %72 = vector.shape_cast %71 : vector<8xf32> to vector<8x1xf32>
      %73 = vector.broadcast %72 : vector<8x1xf32> to vector<8x8xf32>
      %74 = arith.subf %65, %73 : vector<8x8xf32>
      %75 = math.exp %74 : vector<8x8xf32>
      %cst_39 = arith.constant dense<0.000000e+00> : vector<8xf32>
      %76 = vector.multi_reduction <add>, %75, %cst_39 [1] : vector<8x8xf32> to vector<8xf32>
      %77 = vector.shape_cast %76 : vector<8xf32> to vector<8x1xf32>
      %78 = math.log %77 : vector<8x1xf32>
      %79 = arith.addf %72, %78 : vector<8x1xf32>
      %cst_40 = arith.constant dense<0xFF800000> : vector<8xf32>
      %80 = vector.multi_reduction <maximumf>, %65, %cst_40 [0] : vector<8x8xf32> to vector<8xf32>
      %81 = vector.shape_cast %80 : vector<8xf32> to vector<1x8xf32>
      %cst_41 = arith.constant 0.000000e+00 : f32
      %82 = vector.broadcast %cst_41 : f32 to vector<1x8xf32>
      %83 = arith.subf %82, %81 : vector<1x8xf32>
      %84 = math.exp %83 : vector<1x8xf32>
      %85 = math.exp %72 : vector<8x1xf32>
      %86 = vector.broadcast %85 : vector<8x1xf32> to vector<8x8xf32>
      %87 = arith.mulf %75, %86 : vector<8x8xf32>
      %cst_42 = arith.constant dense<0.000000e+00> : vector<8xf32>
      %88 = vector.multi_reduction <add>, %87, %cst_42 [0] : vector<8x8xf32> to vector<8xf32>
      %89 = vector.shape_cast %88 : vector<8xf32> to vector<1x8xf32>
      %90 = arith.mulf %84, %89 : vector<1x8xf32>
      %91 = math.log %90 : vector<1x8xf32>
      %92 = arith.addf %81, %91 : vector<1x8xf32>
      %93 = vector.shape_cast %79 : vector<8x1xf32> to vector<1x8x1xf32>
      %cst_43 = arith.constant dense<0.000000e+00> : vector<1xf32>
      %94 = vector.multi_reduction <add>, %93, %cst_43 [1, 2] : vector<1x8x1xf32> to vector<1xf32>
      %95 = vector.shape_cast %94 : vector<1xf32> to vector<1x1x1xf32>
      %96 = vector.extract %95[0, 0, 0] : f32 from vector<1x1x1xf32>
      %97 = vector.shape_cast %92 : vector<1x8xf32> to vector<1x1x8xf32>
      %cst_44 = arith.constant dense<0.000000e+00> : vector<1xf32>
      %98 = vector.multi_reduction <add>, %97, %cst_44 [1, 2] : vector<1x1x8xf32> to vector<1xf32>
      %99 = vector.shape_cast %98 : vector<1xf32> to vector<1x1x1xf32>
      %100 = vector.extract %99[0, 0, 0] : f32 from vector<1x1x1xf32>
      %101 = arith.addf %96, %100 : f32
      %cst_45 = arith.constant 5.000000e-01 : f32
      %102 = arith.mulf %cst_45, %101 : f32
      %103 = arith.subf %102, %70 : f32
      %cst_46 = arith.constant 8.000000e+00 : f32
      %104 = arith.divf %103, %cst_46 : f32
      %c0_47 = arith.constant 0 : index
      %c0_48 = arith.constant 0 : index
      %105 = memref.load %arg11[%c0_47, %c0_48] : memref<1x1xf32, #tpu.memory_space<smem>>
      %cst_49 = arith.constant 0.00999999977 : f32
      %106 = arith.mulf %cst_49, %105 : f32
      %107 = arith.addf %104, %106 : f32
      %c0_50 = arith.constant 0 : index
      %c0_51 = arith.constant 0 : index
      %108 = memref.load %arg11[%c0_50, %c0_51] : memref<1x1xf32, #tpu.memory_space<smem>>
      memref.store %107, %arg11[%c0_50, %c0_51] : memref<1x1xf32, #tpu.memory_space<smem>>
    } else {
    }
    return
  }
  func.func @transform_0(%arg0: i32) -> (i32, i32) {
    %c0_i32 = arith.constant 0 : i32
    %c0_i32_0 = arith.constant 0 : i32
    return %arg0, %c0_i32 : i32, i32
  }
  func.func @transform_1(%arg0: i32) -> (i32, i32) {
    %c0_i32 = arith.constant 0 : i32
    %c0_i32_0 = arith.constant 0 : i32
    return %arg0, %c0_i32 : i32, i32
  }
  func.func @transform_2(%arg0: i32) -> (i32, i32) {
    %c0_i32 = arith.constant 0 : i32
    %c0_i32_0 = arith.constant 0 : i32
    return %arg0, %c0_i32 : i32, i32
  }
  func.func @transform_3(%arg0: i32) -> (i32, i32) {
    %c0_i32 = arith.constant 0 : i32
    %c0_i32_0 = arith.constant 0 : i32
    return %arg0, %c0_i32 : i32, i32
  }
  func.func @transform_4(%arg0: i32) -> (i32, i32) {
    %c0_i32 = arith.constant 0 : i32
    %c0_i32_0 = arith.constant 0 : i32
    %c0_i32_1 = arith.constant 0 : i32
    return %c0_i32, %c0_i32_0 : i32, i32
  }
  func.func @transform_5(%arg0: i32) -> (i32, i32) {
    %c0_i32 = arith.constant 0 : i32
    %c0_i32_0 = arith.constant 0 : i32
    %c0_i32_1 = arith.constant 0 : i32
    return %c0_i32, %c0_i32_0 : i32, i32
  }
  func.func @transform_6(%arg0: i32) -> (i32, i32) {
    %c0_i32 = arith.constant 0 : i32
    %c0_i32_0 = arith.constant 0 : i32
    %c0_i32_1 = arith.constant 0 : i32
    return %c0_i32, %c0_i32_0 : i32, i32
  }
  func.func @transform_7(%arg0: i32) -> (i32, i32) {
    %c0_i32 = arith.constant 0 : i32
    %c0_i32_0 = arith.constant 0 : i32
    %c0_i32_1 = arith.constant 0 : i32
    return %c0_i32, %c0_i32_0 : i32, i32
  }
  func.func @transform_8(%arg0: i32) -> (i32, i32) {
    %c0_i32 = arith.constant 0 : i32
    %c0_i32_0 = arith.constant 0 : i32
    %c0_i32_1 = arith.constant 0 : i32
    return %c0_i32, %c0_i32_0 : i32, i32
  }
  func.func @transform_9(%arg0: i32) -> (i32, i32) {
    %c0_i32 = arith.constant 0 : i32
    %c0_i32_0 = arith.constant 0 : i32
    %c0_i32_1 = arith.constant 0 : i32
    return %c0_i32, %c0_i32_0 : i32, i32
  }
  func.func @transform_10(%arg0: i32) -> (i32, i32) {
    %c0_i32 = arith.constant 0 : i32
    %c0_i32_0 = arith.constant 0 : i32
    %c0_i32_1 = arith.constant 0 : i32
    return %c0_i32, %c0_i32_0 : i32, i32
  }
}

</mosaic_0001>

<llo_original>
// kernel: tpu_custom_call.1
$region0: #{tpu_custom_call.1}
  #allocation0 [shape = 'u32[]', space=smem, size = 0x4, offset = 0x4, fixed_abs, tag = 'smem constant byte address 0x4 - core index']
  #allocation1 [shape = 'u32[144,128]{1,0:T(1,128)}', space=vmem, size = 0x12000, scoped, tag = 'internal scratch']
  %s0 = inlined_call_operand.hbm [shape: f32[16,32], index: 0, kind: input, shape index: {}]
  %s1 = inlined_call_operand.hbm [shape: f32[16,32], index: 1, kind: input, shape index: {}]
  %s2 = inlined_call_operand.hbm [shape: f32[16,32], index: 2, kind: input, shape index: {}]
  %s3 = inlined_call_operand.hbm [shape: f32[16,32], index: 3, kind: input, shape index: {}]
  %s4 = inlined_call_operand.vmem [shape: f32[8,32], index: 4, kind: input, shape index: {}]
  %s5 = inlined_call_operand.vmem [shape: f32[8,32], index: 5, kind: input, shape index: {}]
  %s6 = inlined_call_operand.hbm [shape: f32[8,32], index: 6, kind: input, shape index: {}]
  %s7 = inlined_call_operand.vmem [shape: f32[8,32], index: 7, kind: input, shape index: {}]
  %s8 = inlined_call_operand.hbm [shape: f32[8,32], index: 8, kind: input, shape index: {}]
  %s9 = inlined_call_operand.vmem [shape: f32[8,32], index: 9, kind: input, shape index: {}]
  %s10 = inlined_call_operand.hbm [shape: f32[1,1], index: 10, kind: output, shape index: {}]
  %s11 = sld [smem:[#allocation0]]
  $region82: #{tpu_custom_call.1} parent=0
    _
  %s13 = ssub.s32 1, %s11
  %s14 = scalar_select 0, %s13, %s11
  $region1: #{tpu_custom_call.1} parent=0
    #allocation2 [shape = 'u8[8192]{0}', space=vmem, size = 0x2000, scoped, tag = 'input window, operand 0, single buffered']
    #allocation3 [shape = 's32[1]{0}', space=sflag, size = 0x4, scoped, tag = 'scoped memory for tpu_custom_call.1']
    #allocation4 [shape = 's32[1]{0}', space=sflag, size = 0x4, scoped, tag = 'scoped memory for tpu_custom_call.1']
    #allocation5 [shape = 'u8[8192]{0}', space=vmem, size = 0x2000, scoped, tag = 'input window, operand 1, single buffered']
    #allocation6 [shape = 's32[1]{0}', space=sflag, size = 0x4, scoped, tag = 'scoped memory for tpu_custom_call.1']
    #allocation7 [shape = 'u8[8192]{0}', space=vmem, size = 0x2000, scoped, tag = 'input window, operand 2, single buffered']
    #allocation8 [shape = 'u8[8192]{0}', space=vmem, size = 0x2000, scoped, tag = 'input window, operand 3, single buffered']
    #allocation9 [shape = 's32[1]{0}', space=sflag, size = 0x4, scoped, tag = 'scoped memory for tpu_custom_call.1']
    #allocation10 [shape = 'u8[4096]{0}', space=vmem, size = 0x1000, scoped, tag = 'input window, operand 6, single buffered']
    #allocation11 [shape = 'u8[4096]{0}', space=vmem, size = 0x1000, scoped, tag = 'input window, operand 8, single buffered']
    #allocation12 [shape = 's32[1]{0}', space=sflag, size = 0x4, scoped, tag = 'scoped memory for tpu_custom_call.1']
    #allocation13 [shape = 'u8[512]{0}', space=smem, size = 0x200, scoped, tag = 'output window, operand 0, single buffered']
    %15 = vsyncpa [#allocation3], 0
    %16 = vsyncpa [#allocation6], 0
    %17 = vsyncpa [#allocation9], 0
    %18 = vsyncpa [#allocation12], 0
    %19 = vsyncpa [#allocation4], 0
    // Predicated region
    $region2: #{tpu_custom_call.1} parent=1 // pred_check
      _
    $region3: #{tpu_custom_call.1} parent=1 // pred_check_branch
      %21 = sbr.rel (0) target = $region5
    $region4: #{tpu_custom_call.1} parent=1 // pred_region
      %s23 = ssub.s32 256, 256
      %24 = vsyncadd [#allocation3], %s23
      %s25 = sshll.u32 [#allocation2], 4
      %s26 = int_to_ptr.vmem [resolvable:$true] %s25
      %31 = dma.hbm_to_vmem [thread:$0]  %s0, 256, %s26, [#allocation3], 128, 128, 8
    $region5: #{tpu_custom_call.1} parent=1 // pred_fallthru
      _
    // Predicated region
    $region6: #{tpu_custom_call.1} parent=1 // pred_check
      _
    $region7: #{tpu_custom_call.1} parent=1 // pred_check_branch
      %33 = sbr.rel (0) target = $region9
    $region8: #{tpu_custom_call.1} parent=1 // pred_region
      %s35 = ssub.s32 256, 256
      %36 = vsyncadd [#allocation6], %s35
      %s37 = sshll.u32 [#allocation5], 4
      %s38 = int_to_ptr.vmem [resolvable:$true] %s37
      %43 = dma.hbm_to_vmem [thread:$0]  %s1, 256, %s38, [#allocation6], 128, 128, 8
    $region9: #{tpu_custom_call.1} parent=1 // pred_fallthru
      _
    // Predicated region
    $region10: #{tpu_custom_call.1} parent=1 // pred_check
      _
    $region11: #{tpu_custom_call.1} parent=1 // pred_check_branch
      %45 = sbr.rel (0) target = $region13
    $region12: #{tpu_custom_call.1} parent=1 // pred_region
      %s47 = ssub.s32 256, 256
      %48 = vsyncadd [#allocation6], %s47
      %s49 = sshll.u32 [#allocation7], 4
      %s50 = int_to_ptr.vmem [resolvable:$true] %s49
      %55 = dma.hbm_to_vmem [thread:$0]  %s2, 256, %s50, [#allocation6], 128, 128, 8
    $region13: #{tpu_custom_call.1} parent=1 // pred_fallthru
      _
    // Predicated region
    $region14: #{tpu_custom_call.1} parent=1 // pred_check
      _
    $region15: #{tpu_custom_call.1} parent=1 // pred_check_branch
      %57 = sbr.rel (0) target = $region17
    $region16: #{tpu_custom_call.1} parent=1 // pred_region
      %s59 = ssub.s32 256, 256
      %60 = vsyncadd [#allocation9], %s59
      %s61 = sshll.u32 [#allocation8], 4
      %s62 = int_to_ptr.vmem [resolvable:$true] %s61
      %67 = dma.hbm_to_vmem [thread:$0]  %s3, 256, %s62, [#allocation9], 128, 128, 8
    $region17: #{tpu_custom_call.1} parent=1 // pred_fallthru
      _
    // Predicated region
    $region18: #{tpu_custom_call.1} parent=1 // pred_check
      _
    $region19: #{tpu_custom_call.1} parent=1 // pred_check_branch
      %69 = sbr.rel (0) target = $region21
    $region20: #{tpu_custom_call.1} parent=1 // pred_region
      _
    $region21: #{tpu_custom_call.1} parent=1 // pred_fallthru
      _
    // Predicated region
    $region22: #{tpu_custom_call.1} parent=1 // pred_check
      _
    $region23: #{tpu_custom_call.1} parent=1 // pred_check_branch
      %71 = sbr.rel (0) target = $region25
    $region24: #{tpu_custom_call.1} parent=1 // pred_region
      _
    $region25: #{tpu_custom_call.1} parent=1 // pred_fallthru
      _
    // Predicated region
    $region26: #{tpu_custom_call.1} parent=1 // pred_check
      _
    $region27: #{tpu_custom_call.1} parent=1 // pred_check_branch
      %73 = sbr.rel (0) target = $region29
    $region28: #{tpu_custom_call.1} parent=1 // pred_region
      %s75 = ssub.s32 128, 128
      %76 = vsyncadd [#allocation9], %s75
      %s78 = sshll.u32 [#allocation10], 4
      %s79 = int_to_ptr.vmem [resolvable:$true] %s78
      %81 = dma.hbm_to_vmem [thread:$0]  %s6, 128, %s79, [#allocation9]
    $region29: #{tpu_custom_call.1} parent=1 // pred_fallthru
      _
    // Predicated region
    $region30: #{tpu_custom_call.1} parent=1 // pred_check
      _
    $region31: #{tpu_custom_call.1} parent=1 // pred_check_branch
      %83 = sbr.rel (0) target = $region33
    $region32: #{tpu_custom_call.1} parent=1 // pred_region
      _
    $region33: #{tpu_custom_call.1} parent=1 // pred_fallthru
      _
    // Predicated region
    $region34: #{tpu_custom_call.1} parent=1 // pred_check
      _
    $region35: #{tpu_custom_call.1} parent=1 // pred_check_branch
      %85 = sbr.rel (0) target = $region37
    $region36: #{tpu_custom_call.1} parent=1 // pred_region
      %s87 = ssub.s32 128, 128
      %88 = vsyncadd [#allocation12], %s87
      %s90 = sshll.u32 [#allocation11], 4
      %s91 = int_to_ptr.vmem [resolvable:$true] %s90
      %93 = dma.hbm_to_vmem [thread:$0]  %s8, 128, %s91, [#allocation12]
    $region37: #{tpu_custom_call.1} parent=1 // pred_fallthru
      _
    // Predicated region
    $region38: #{tpu_custom_call.1} parent=1 // pred_check
      _
    $region39: #{tpu_custom_call.1} parent=1 // pred_check_branch
      %95 = sbr.rel (0) target = $region41
    $region40: #{tpu_custom_call.1} parent=1 // pred_region
      _
    $region41: #{tpu_custom_call.1} parent=1 // pred_fallthru
      _
    // Predicated region
    $region42: #{tpu_custom_call.1} parent=1 // pred_check
      _
    $region43: #{tpu_custom_call.1} parent=1 // pred_check_branch
      %97 = sbr.rel (0) target = $region45
    $region44: #{tpu_custom_call.1} parent=1 // pred_region
      %98 = dma.done [#allocation3], 256
    $region45: #{tpu_custom_call.1} parent=1 // pred_fallthru
      _
    // Predicated region
    $region46: #{tpu_custom_call.1} parent=1 // pred_check
      _
    $region47: #{tpu_custom_call.1} parent=1 // pred_check_branch
      %100 = sbr.rel (0) target = $region49
    $region48: #{tpu_custom_call.1} parent=1 // pred_region
      %101 = dma.done [#allocation6], 256
    $region49: #{tpu_custom_call.1} parent=1 // pred_fallthru
      _
    // Predicated region
    $region50: #{tpu_custom_call.1} parent=1 // pred_check
      _
    $region51: #{tpu_custom_call.1} parent=1 // pred_check_branch
      %103 = sbr.rel (0) target = $region53
    $region52: #{tpu_custom_call.1} parent=1 // pred_region
      %104 = dma.done [#allocation6], 256
    $region53: #{tpu_custom_call.1} parent=1 // pred_fallthru
      _
    // Predicated region
    $region54: #{tpu_custom_call.1} parent=1 // pred_check
      _
    $region55: #{tpu_custom_call.1} parent=1 // pred_check_branch
      %106 = sbr.rel (0) target = $region57
    $region56: #{tpu_custom_call.1} parent=1 // pred_region
      %107 = dma.done [#allocation9], 256
    $region57: #{tpu_custom_call.1} parent=1 // pred_fallthru
      _
    // Predicated region
    $region58: #{tpu_custom_call.1} parent=1 // pred_check
      _
    $region59: #{tpu_custom_call.1} parent=1 // pred_check_branch
      %109 = sbr.rel (0) target = $region61
    $region60: #{tpu_custom_call.1} parent=1 // pred_region
      %110 = dma.done [#allocation9], 128
    $region61: #{tpu_custom_call.1} parent=1 // pred_fallthru
      _
    // Predicated region
    $region62: #{tpu_custom_call.1} parent=1 // pred_check
      _
    $region63: #{tpu_custom_call.1} parent=1 // pred_check_branch
      %112 = sbr.rel (0) target = $region65
    $region64: #{tpu_custom_call.1} parent=1 // pred_region
      %113 = dma.done [#allocation12], 128
    $region65: #{tpu_custom_call.1} parent=1 // pred_fallthru
      _
    %p114 = scmp.eq.s32.totalorder 0, 0
    // Predicated region
    $region66: #{tpu_custom_call.1} parent=1 // pred_check
      %p115 = pneg %p114
    $region67: #{tpu_custom_call.1} parent=1 // pred_check_branch
      %117 = sbr.rel (%p115) target = $region69
    $region68: #{tpu_custom_call.1} parent=1 // pred_region
      %s118 = scalar_lea.smem [#allocation13], 0
      %119 = sst [smem:[%s118]] 0.0
    $region69: #{tpu_custom_call.1} parent=1 // pred_fallthru
      _
    %v120 = vld [vmem:[#allocation2] sm:$0xff]
    %v121 = vld [vmem:[#allocation2 + $0x8] sm:$0xff]
    %v122 = vld [vmem:[#allocation5] sm:$0xff]
    %v123 = vld [vmem:[#allocation5 + $0x8] sm:$0xff]
    %v124 = vld [vmem:[#allocation7] sm:$0xff]
    %v125 = vld [vmem:[#allocation7 + $0x8] sm:$0xff]
    %v126 = vld [vmem:[#allocation8] sm:$0xff]
    %v127 = vld [vmem:[#allocation8 + $0x8] sm:$0xff]
    %v128 = vsub.f32 %v120, %v124
    %v129 = vsub.f32 %v121, %v125
    %v130 = vsub.f32 %v126, %v122
    %v131 = vsub.f32 %v127, %v123
    %v132 = vsub.f32 %v130, 1.0
    %v133 = vsub.f32 %v131, 1.0
    %v134 = vsub.f32 %v122, %v126
    %v135 = vsub.f32 %v123, %v127
    %v136 = vmul.f32 %v134, 1.442695
    %v137 = vpow.pop %v136
    %v138 = vmul.f32 %v135, 1.442695
    %v139 = vpow.pop %v138
    %v140 = vadd.f32 %v132, %v137
    %v141 = vadd.f32 %v133, %v139
    %v142 = vmul.f32 %v128, %v128
    %v143 = vmul.f32 %v129, %v129
    %v144 = vsub.f32 0.0, %v126
    %v145 = vsub.f32 0.0, %v127
    %v146 = vmul.f32 %v144, 1.442695
    %v147 = vpow.pop %v146
    %v148 = vmul.f32 %v145, 1.442695
    %v149 = vpow.pop %v148
    %v150 = vmul.f32 %v142, %v147
    %v151 = vmul.f32 %v143, %v149
    %v152 = vadd.f32 %v140, %v150
    %v153 = vadd.f32 %v141, %v151
    %vm154 = vcmask 261120
    %v155 = vsel %vm154, %v152, 0.0
    %v156 = vsel %vm154, %v153, 0.0
    %v157 = vadd.f32 %v155, %v156
    %158 = vadd.xlane.f32.xlu0 %v157
    %v159 = vpop.xlane.xlu0 %158
    %v160 = vrot.slane %v159, 4
    %v161 = vadd.f32 %v159, %v160
    %v162 = vrot.slane %v161, 2
    %v163 = vadd.f32 %v161, %v162
    %v164 = vrot.slane %v163, 1
    %v165 = vadd.f32 %v163, %v164
    %s166 = vtos %v165
    %s167 = smul.f32 %s166, 0.5
    %s168 = sld [smem:[#allocation13]]
    %s169 = sadd.f32 %s168, %s167
    %s170 = scalar_lea.smem [#allocation13], 0
    %171 = sst [smem:[%s170]] %s169
    // Predicated region
    $region70: #{tpu_custom_call.1} parent=1 // pred_check
      %p172 = pneg %p114
    $region71: #{tpu_custom_call.1} parent=1 // pred_check_branch
      %174 = sbr.rel (%p172) target = $region73
    $region72: #{tpu_custom_call.1} parent=1 // pred_region
      %v175 = vld [vmem:[%s4] sm:$0xff]
      %v176 = vld [vmem:[#allocation10] sm:$0xff]
      %v177 = vld [vmem:[%s5] sm:$0xff]
      %v178 = vmul.f32 %v177, 0.5
      %v179 = vmul.f32 %v178, 1.442695
      %v180 = vpow.pop %v179
      %v181 = vmul.f32 %v176, %v180
      %v182 = vadd.f32 %v175, %v181
      %v183 = vld [vmem:[%s7] sm:$0xff]
      %v184 = vld [vmem:[%s9] sm:$0xff]
      %v185 = vld [vmem:[#allocation11] sm:$0xff]
      %v186 = vmul.f32 %v185, 0.5
      %v187 = vmul.f32 %v186, 1.442695
      %v188 = vpow.pop %v187
      %v189 = vmul.f32 %v184, %v188
      %v190 = vadd.f32 %v183, %v189
      %v191 = vmul.f32 %v182, %v182
      %v192 = vsel %vm154, %v191, 0.0
      %193 = vadd.xlane.f32.xlu0 %v192
      %v194 = vpop.xlane.xlu0 %193
      %v195 = vmul.f32 %v190, %v190
      %v196 = vsel %vm154, %v195, 0.0
      %197 = vadd.xlane.f32.xlu0 %v196
      %v198 = vpop.xlane.xlu0 %197
      %v199 = vmax.f32 %v194, 1e-24
      %v200 = vrsqrt.pop %v199
      %v201 = vmul.f32 %v200, 14.285714
      %v202 = vmul.f32 %v182, %v201
      %v203 = vmax.f32 %v198, 1e-24
      %v204 = vrsqrt.pop %v203
      %v205 = vmul.f32 %v190, %v204
      %v207 = vsel %vm154, %v202, 0
      %v210 = vsel %vm154, %v205, 0
      %212 = vmatprep.subr.mxu0 0.0
      %213 = vmatpush1.xpose.msra.mxu0 %v210
      %214 = vmatprep.subr.mxu0 0.0
      %215 = vmatpush1.xpose.msra.mxu0 0.0
      %216 = vmatprep.subr.mxu0 0.0
      %217 = vmatpush1.xpose.msra.mxu0 0.0
      %218 = vmatprep.subr.mxu0 0.0
      %219 = vmatpush1.xpose.msra.mxu0 0.0
      %220 = vmatprep.subr.mxu0 0.0
      %221 = vmatpush1.xpose.msra.mxu0 0.0
      %222 = vmatprep.subr.mxu0 0.0
      %223 = vmatpush1.xpose.msra.mxu0 0.0
      %224 = vmatprep.subr.mxu0 0.0
      %225 = vmatpush1.xpose.msra.mxu0 0.0
      %226 = vmatprep.subr.mxu0 0.0
      %227 = vmatpush1.xpose.msra.mxu0 0.0
      %228 = vmatprep.subr.mxu0 0.0
      %229 = vmatpush1.xpose.msra.mxu0 0.0
      %230 = vmatprep.subr.mxu0 0.0
      %231 = vmatpush1.xpose.msra.mxu0 0.0
      %232 = vmatprep.subr.mxu0 0.0
      %233 = vmatpush1.xpose.msra.mxu0 0.0
      %234 = vmatprep.subr.mxu0 0.0
      %235 = vmatpush1.xpose.msra.mxu0 0.0
      %236 = vmatprep.subr.mxu0 0.0
      %237 = vmatpush1.xpose.msra.mxu0 0.0
      %238 = vmatprep.subr.mxu0 0.0
      %239 = vmatpush1.xpose.msra.mxu0 0.0
      %240 = vmatprep.subr.mxu0 0.0
      %241 = vmatpush1.xpose.msra.mxu0 0.0
      %242 = vmatprep.subr.mxu0 0.0
      %243 = vmatpush1.xpose.msra.mxu0 0.0
      %244 = vmatprep.subr.mxu0 0.0
      %245 = vmatpush1.xpose.msra.mxu0 0.0
      %246 = vmatprep.subr.mxu0 0.0
      %247 = vmatpush1.xpose.msra.mxu0 0.0
      %248 = vmatprep.subr.mxu0 0.0
      %249 = vmatpush1.xpose.msra.mxu0 0.0
      %250 = vmatprep.subr.mxu0 0.0
      %251 = vmatpush1.xpose.msra.mxu0 0.0
      %252 = vmatprep.subr.mxu0 0.0
      %253 = vmatpush1.xpose.msra.mxu0 0.0
      %254 = vmatprep.subr.mxu0 0.0
      %255 = vmatpush1.xpose.msra.mxu0 0.0
      %256 = vmatprep.subr.mxu0 0.0
      %257 = vmatpush1.xpose.msra.mxu0 0.0
      %258 = vmatprep.subr.mxu0 0.0
      %259 = vmatpush1.xpose.msra.mxu0 0.0
      %260 = vmatprep.subr.mxu0 0.0
      %261 = vmatpush1.xpose.msra.mxu0 0.0
      %262 = vmatprep.subr.mxu0 0.0
      %263 = vmatpush1.xpose.msra.mxu0 0.0
      %264 = vmatprep.subr.mxu0 0.0
      %265 = vmatpush1.xpose.msra.mxu0 0.0
      %266 = vmatprep.subr.mxu0 0.0
      %267 = vmatpush1.xpose.msra.mxu0 0.0
      %268 = vmatprep.subr.mxu0 0.0
      %269 = vmatpush1.xpose.msra.mxu0 0.0
      %270 = vmatprep.subr.mxu0 0.0
      %271 = vmatpush1.xpose.msra.mxu0 0.0
      %272 = vmatprep.subr.mxu0 0.0
      %273 = vmatpush1.xpose.msra.mxu0 0.0
      %274 = vmatprep.subr.mxu0 0.0
      %275 = vmatpush1.xpose.msra.mxu0 0.0
      %276 = vmatprep.mubr.f32.mxu0 0.0
      %277 = vmatmul.mubr.f32.gmra.mrb[0].mxu0 %v207
      %v278 = vpop.f32.mrb[0].mxu0
      %v279 = vadd.f32 0.0, %v278
      %v280 = vpop.f32.mrb[0].mxu0
      %281 = vdwg.mxu0
      %v282 = vmul.f32 %v202, %v205
      %v283 = vsel %vm154, %v282, 0.0
      %284 = vadd.xlane.f32.xlu0 %v283
      %v285 = vpop.xlane.xlu0 %284
      %v286 = vrot.slane %v285, 4
      %v287 = vadd.f32 %v285, %v286
      %v288 = vrot.slane %v287, 2
      %v289 = vadd.f32 %v287, %v288
      %v290 = vrot.slane %v289, 1
      %v291 = vadd.f32 %v289, %v290
      %s292 = vtos %v291
      %vm293 = vcmask 64512
      %v294 = vsel %vm293, %v279, -inf
      %295 = vmax.xlane.f32.xlu0 %v294
      %v296 = vpop.xlane.xlu0 %295
      %v297 = vsub.f32 %v279, %v296
      %v298 = vmul.f32 %v297, 1.442695
      %v299 = vpow.pop %v298
      %v300 = vsel %vm293, %v299, 0.0
      %301 = vadd.xlane.f32.xlu0 %v300
      %v302 = vpop.xlane.xlu0 %301
      %v303 = vlog2.pop %v302
      %v304 = vmul.f32 %v303, 0.6931472
      %v305 = vadd.f32 %v296, %v304
      %v306 = vrot.slane %v294, 4
      %v307 = vmax.f32 %v294, %v306
      %v308 = vrot.slane %v307, 2
      %v309 = vmax.f32 %v307, %v308
      %v310 = vrot.slane %v309, 1
      %v311 = vmax.f32 %v309, %v310
      %v312 = vsub.f32 0.0, %v311
      %v313 = vmul.f32 %v312, 1.442695
      %v314 = vpow.pop %v313
      %v315 = vmul.f32 %v296, 1.442695
      %v316 = vpow.pop %v315
      %v317 = vmul.f32 %v299, %v316
      %v318 = vsel %vm293, %v317, 0.0
      %v319 = vrot.slane %v318, 4
      %v320 = vadd.f32 %v318, %v319
      %v321 = vrot.slane %v320, 2
      %v322 = vadd.f32 %v320, %v321
      %v323 = vrot.slane %v322, 1
      %v324 = vadd.f32 %v322, %v323
      %v325 = vmul.f32 %v314, %v324
      %v326 = vlog2.pop %v325
      %v327 = vmul.f32 %v326, 0.6931472
      %v328 = vadd.f32 %v311, %v327
      %vm329 = vcmask 7168
      %v330 = vsel %vm329, %v305, 0.0
      %331 = vadd.xlane.f32.xlu0 %v330
      %v332 = vpop.xlane.xlu0 %331
      %v333 = vrot.slane %v332, 4
      %v334 = vadd.f32 %v332, %v333
      %v335 = vrot.slane %v334, 2
      %v336 = vadd.f32 %v334, %v335
      %v337 = vrot.slane %v336, 1
      %v338 = vadd.f32 %v336, %v337
      %s339 = vtos %v338
      %vm340 = vcmask 57344
      %v341 = vsel %vm340, %v328, 0.0
      %342 = vadd.xlane.f32.xlu0 %v341
      %v343 = vpop.xlane.xlu0 %342
      %v344 = vrot.slane %v343, 4
      %v345 = vadd.f32 %v343, %v344
      %v346 = vrot.slane %v345, 2
      %v347 = vadd.f32 %v345, %v346
      %v348 = vrot.slane %v347, 1
      %v349 = vadd.f32 %v347, %v348
      %s350 = vtos %v349
      %s351 = sadd.f32 %s339, %s350
      %s352 = smul.f32 %s351, 0.5
      %s353 = ssub.f32 %s352, %s292
      %v354 = vrcp.pop 8.0
      %s355 = vtos %v354
      %s356 = smul.f32 %s353, %s355
      %s357 = sld [smem:[#allocation13]]
      %s358 = smul.f32 %s357, 0.01
      %s359 = sadd.f32 %s356, %s358
      %360 = sst [smem:[%s170]] %s359
    $region73: #{tpu_custom_call.1} parent=1 // pred_fallthru
      _
    // Predicated region
    $region74: #{tpu_custom_call.1} parent=1 // pred_check
      _
    $region75: #{tpu_custom_call.1} parent=1 // pred_check_branch
      %362 = sbr.rel (0) target = $region77
    $region76: #{tpu_custom_call.1} parent=1 // pred_region
      %s364 = ssub.s32 16, 16
      %365 = vsyncadd [#allocation4], %s364
      %368 = dma.smem_to_hbm [#allocation13], 16, %s10, [#allocation4]
    $region77: #{tpu_custom_call.1} parent=1 // pred_fallthru
      _
    // Predicated region
    $region78: #{tpu_custom_call.1} parent=1 // pred_check
      _
    $region79: #{tpu_custom_call.1} parent=1 // pred_check_branch
      %370 = sbr.rel (0) target = $region81
    $region80: #{tpu_custom_call.1} parent=1 // pred_region
      %371 = dma.done [#allocation4], 16
    $region81: #{tpu_custom_call.1} parent=1 // pred_fallthru
      _
    %372 = sfence
    %373 = vsyncpa [#allocation3], 1
    %374 = vsyncpa [#allocation6], 1
    %375 = vsyncpa [#allocation9], 1
    %376 = vsyncpa [#allocation12], 1
    %377 = vsyncpa [#allocation4], 1

</llo_original>
